<compile_context>
chip_gen: v5e
topology: v5e:2x2
jax: 0.10.0
libtpu: 0.0.40
codegen_flags: <defaults>
</compile_context>

<pallas_src>
import functools

import jax
import jax.numpy as jnp
from jax.experimental import pallas as pl
from jax.experimental.pallas import tpu as pltpu


def _round_up(n: int, m: int) -> int:
    return ((n + m - 1) // m) * m


def feature_embed_kernel(x_ref, pitch_ref, w_ref, w_pitch_ref, bias_ref, out_ref):
    # One MXU pass over the streamed text-feature rows, f32 accumulation.
    acc = jnp.dot(x_ref[...], w_ref[...], preferred_element_type=jnp.float32)
    # Pitch projection as an f32 rank-1 VPU update: (tm,1) * (1,Hp).
    # VALU slot has huge slack vs the DMA, so this is effectively free, and it
    # keeps the raw-Hz pitch values out of any bf16 MXU path.
    acc = acc + pitch_ref[...] * w_pitch_ref[...]
    # Fused f32 bias row: text bias + speaker embed + pitch bias + pitch-shift proj.
    out_ref[...] = (acc + bias_ref[...]).astype(out_ref.dtype)


@functools.partial(jax.jit, static_argnames=("output_dtype",))
def feature_embedding_forward(speakers, text_features, pitches, pitch_shift,
                              params, *, output_dtype=jnp.float32):
    """Mirrors FeatureEmbeddingWrapper.forward.

    speakers:      int32 [1]      (speaker id)
    text_features: [T, C]         (PyTorch wrapper unsqueezes to [1, T, C]);
                                  streamed in its native dtype (f32 or bf16)
    pitches:       f32   [T]      (unsqueezed to [1, T])
    pitch_shift:   f32   [1] or None
    returns:       [1, T, H] in `output_dtype`
    """
    T, C = text_features.shape
    H = params["w_text"].shape[1]

    # ---- Fold every T-independent term into a single f32 bias row [1, H] ----
    spk_vec = params["spk_embed"][speakers].astype(jnp.float32).reshape(1, H)
    combined_bias = (params["b_text"].astype(jnp.float32).reshape(1, H)
                     + spk_vec
                     + params["b_pitch"].astype(jnp.float32).reshape(1, H))
    if pitch_shift is not None:
        combined_bias = combined_bias + (
            pitch_shift.reshape(1, 1).astype(jnp.float32)
            * params["w_shift"].astype(jnp.float32).reshape(1, H)
            + params["b_shift"].astype(jnp.float32).reshape(1, H))

    pitch_col = pitches.reshape(T, 1).astype(jnp.float32)

    # ---- Tiny configurations: plain XLA (Pallas overhead/padding dominates) --
    if H < 128 or T < 64:
        feats = (text_features.astype(jnp.float32)
                 @ params["w_text"].astype(jnp.float32)
                 + pitch_col * params["w_pitch"].astype(jnp.float32).reshape(1, H)
                 + combined_bias)
        return feats[None].astype(output_dtype)

    # ---- Pallas path ---------------------------------------------------------
    Hp = _round_up(H, 128)        # no-op when H is already a multiple of 128

    # >= 2 grid steps so the "parallel" axis shards across both v7x TensorCores;
    # otherwise ~512-row tiles, balanced so ragged T doesn't blow up wasted rows.
    n_tiles = max(2, pl.cdiv(T, 512))
    tm = max(8, _round_up(pl.cdiv(T, n_tiles), 8))
    grid = (pl.cdiv(T, tm),)

    x = text_features                                    # streamed as-is (no copy)
    w = params["w_text"].astype(x.dtype)                 # one-off resident cast
    w_pitch = params["w_pitch"].astype(jnp.float32).reshape(1, H)
    bias = combined_bias
    if Hp != H:
        w = jnp.pad(w, ((0, 0), (0, Hp - H)))
        w_pitch = jnp.pad(w_pitch, ((0, 0), (0, Hp - H)))
        bias = jnp.pad(bias, ((0, 0), (0, Hp - H)))

    # VMEM budget: double-buffered streams + resident weight/bias (with physical
    # sublane/lane padding) + headroom, capped at 75% of physical VMEM.
    x_isz = jnp.dtype(x.dtype).itemsize
    o_isz = jnp.dtype(output_dtype).itemsize
    needed = (2 * tm * _round_up(C, 128) * x_isz      # x tiles
              + 2 * tm * 128 * 4                      # pitch column tiles (lane pad)
              + 2 * _round_up(C, 8) * Hp * x_isz      # resident weight (buffered)
              + 2 * 2 * 8 * Hp * 4                    # w_pitch + bias rows
              + 2 * tm * Hp * o_isz                   # output tiles
              + (4 << 20))                            # headroom
    try:
        vmem_cap = int(pltpu.get_tpu_info().vmem_capacity_bytes)
    except Exception:
        vmem_cap = 64 << 20                           # smallest per-core VMEM (v7x)
    vmem_bytes = min(max(needed, 8 << 20), (vmem_cap * 3) // 4)

    out = pl.pallas_call(
        feature_embed_kernel,
        out_shape=jax.ShapeDtypeStruct((T, Hp), output_dtype),
        grid_spec=pltpu.PrefetchScalarGridSpec(
            num_scalar_prefetch=0,
            grid=grid,
            in_specs=[
                pl.BlockSpec((tm, C), lambda i: (i, 0)),    # streamed text rows
                pl.BlockSpec((tm, 1), lambda i: (i, 0)),    # streamed f32 pitch col
                pl.BlockSpec((C, Hp), lambda i: (0, 0)),    # resident weight
                pl.BlockSpec((1, Hp), lambda i: (0, 0)),    # resident f32 w_pitch row
                pl.BlockSpec((1, Hp), lambda i: (0, 0)),    # resident fused f32 bias
            ],
            out_specs=pl.BlockSpec((tm, Hp), lambda i: (i, 0)),
        ),
        compiler_params=pltpu.CompilerParams(
            dimension_semantics=("parallel",),
            vmem_limit_bytes=vmem_bytes,
        ),
    )(x, pitch_col, w, w_pitch, bias)

    if Hp != H:
        out = out[:, :H]
    return out[None]      # restore the unsqueezed batch dim -> [1, T, H]


def _reference_forward(speakers, text_features, pitches, pitch_shift, params):
    feats = text_features.astype(jnp.float32) @ params["w_text"] + params["b_text"]
    feats = feats + params["spk_embed"][speakers]
    feats = feats + pitches[:, None] * params["w_pitch"] + params["b_pitch"]
    feats = feats + pitch_shift.reshape(1, 1) * params["w_shift"] + params["b_shift"]
    return feats[None, ...]


def _make_params(key, C, H, num_spk):
    keys = jax.random.split(key, 7)
    return {
        "w_text":    jax.random.normal(keys[0], (C, H), jnp.float32) * 0.1,
        "b_text":    jax.random.normal(keys[1], (1, H), jnp.float32) * 0.1,
        "spk_embed": jax.random.normal(keys[2], (num_spk, H), jnp.float32) * 0.1,
        "w_pitch":   jax.random.normal(keys[3], (1, H), jnp.float32) * 0.1,
        "b_pitch":   jax.random.normal(keys[4], (1, H), jnp.float32) * 0.1,
        "w_shift":   jax.random.normal(keys[5], (1, H), jnp.float32) * 0.1,
        "b_shift":   jax.random.normal(keys[6], (1, H), jnp.float32) * 0.1,
    }


if __name__ == "__main__":
    # Moderate, prod-like shapes: exercises the Pallas path with a 2-step grid
    # (megacore split) and a ragged last block (T not a multiple of tm).
    T, C, H, NUM_SPK = 200, 256, 256, 4

    key = jax.random.PRNGKey(0)
    kp, k7, k8, k9 = jax.random.split(key, 4)
    params = _make_params(kp, C, H, NUM_SPK)

    speakers = jnp.array([1], dtype=jnp.int32)
    text_features = jax.random.normal(k7, (T, C), jnp.float32)
    pitches = jax.random.uniform(k8, (T,), jnp.float32, 100.0, 400.0)
    pitch_shift = jax.random.normal(k9, (1,), jnp.float32)

    ref = _reference_forward(speakers, text_features, pitches, pitch_shift, params)

    # f32 activation stream, f32 output.
    out_f32 = feature_embedding_forward(speakers, text_features, pitches,
                                        pitch_shift, params,
                                        output_dtype=jnp.float32)
    out_f32 = jax.block_until_ready(out_f32)
    assert out_f32.shape == (1, T, H), out_f32.shape
    assert jnp.allclose(out_f32, ref, atol=3e-2, rtol=3e-3), "f32 mismatch vs reference"

    # bf16 activation stream (as if the upstream text encoder emitted bf16) and
    # bf16 output for a bf16 consumer. Pitch stays f32 via the in-kernel rank-1
    # update, so only the text-feature matmul sees bf16 rounding.
    out_bf16 = feature_embedding_forward(speakers,
                                         text_features.astype(jnp.bfloat16),
                                         pitches, pitch_shift, params,
                                         output_dtype=jnp.bfloat16)
    out_bf16 = jax.block_until_ready(out_bf16)
    assert out_bf16.shape == (1, T, H), out_bf16.shape
    assert out_bf16.dtype == jnp.bfloat16
    assert jnp.allclose(out_bf16.astype(jnp.float32), ref, atol=0.3, rtol=2e-2), \
        "bf16 mismatch vs reference"

    # Tiny-config fallback path (H < 128): plain XLA, identical semantics.
    tT, tC, tH = 8, 32, 32
    tparams = _make_params(kp, tC, tH, NUM_SPK)
    t_text = jax.random.normal(k7, (tT, tC), jnp.float32)
    t_pitch = jax.random.uniform(k8, (tT,), jnp.float32, 100.0, 400.0)
    t_ref = _reference_forward(speakers, t_text, t_pitch, pitch_shift, tparams)
    t_out = jax.block_until_ready(
        feature_embedding_forward(speakers, t_text, t_pitch, pitch_shift, tparams))
    assert t_out.shape == (1, tT, tH), t_out.shape
    assert jnp.allclose(t_out, t_ref, atol=1e-4, rtol=1e-4), "tiny-path mismatch"

    print("KERNEL_OK")
</pallas_src>

<mosaic_0001>
module attributes {stable_mosaic.version = 11 : i64} {
  func.func @feature_embed_kernel(%arg0: i32, %arg1: memref<104x256xf32, #tpu.memory_space<vmem>>, %arg2: memref<104x1xf32, #tpu.memory_space<vmem>>, %arg3: memref<256x256xf32, #tpu.memory_space<vmem>>, %arg4: memref<1x256xf32, #tpu.memory_space<vmem>>, %arg5: memref<1x256xf32, #tpu.memory_space<vmem>>, %arg6: memref<104x256xf32, #tpu.memory_space<vmem>>) attributes {dimension_semantics = [#tpu.dimension_semantics<parallel>], iteration_bounds = array<i64: 2>, scalar_prefetch = 0 : i64, scratch_operands = 0 : i64, tpu.core_type = #tpu.core_type<tc>, window_params = [{transform_indices = @transform_0, window_bounds = array<i64: 104, 256>}, {transform_indices = @transform_1, window_bounds = array<i64: 104, 1>}, {pipeline_mode = #tpu.pipeline_mode<synchronous>, transform_indices = @transform_2, window_bounds = array<i64: 256, 256>}, {pipeline_mode = #tpu.pipeline_mode<synchronous>, transform_indices = @transform_3, window_bounds = array<i64: 1, 256>}, {pipeline_mode = #tpu.pipeline_mode<synchronous>, transform_indices = @transform_4, window_bounds = array<i64: 1, 256>}, {transform_indices = @transform_5, window_bounds = array<i64: 104, 256>}]} {
    %c0 = arith.constant 0 : index
    %c0_0 = arith.constant 0 : index
    %0 = vector.load %arg1[%c0, %c0_0] : memref<104x256xf32, #tpu.memory_space<vmem>>, vector<104x256xf32>
    %c0_1 = arith.constant 0 : index
    %c0_2 = arith.constant 0 : index
    %1 = vector.load %arg3[%c0_1, %c0_2] : memref<256x256xf32, #tpu.memory_space<vmem>>, vector<256x256xf32>
    %cst = arith.constant dense<0.000000e+00> : vector<104x256xf32>
    %2 = tpu.matmul %0, %1, %cst {dimension_numbers = #tpu.dot_dimension_numbers<[1], [0], [0], [1], [0, 0, 1, 1], [], []>} : vector<104x256xf32>, vector<256x256xf32>, vector<104x256xf32> -> vector<104x256xf32>
    %c0_3 = arith.constant 0 : index
    %c0_4 = arith.constant 0 : index
    %3 = vector.load %arg2[%c0_3, %c0_4] : memref<104x1xf32, #tpu.memory_space<vmem>>, vector<104x1xf32>
    %c0_5 = arith.constant 0 : index
    %c0_6 = arith.constant 0 : index
    %4 = vector.load %arg4[%c0_5, %c0_6] : memref<1x256xf32, #tpu.memory_space<vmem>>, vector<1x256xf32>
    %5 = vector.broadcast %3 : vector<104x1xf32> to vector<104x256xf32>
    %6 = vector.broadcast %4 : vector<1x256xf32> to vector<104x256xf32>
    %7 = arith.mulf %5, %6 : vector<104x256xf32>
    %8 = arith.addf %2, %7 : vector<104x256xf32>
    %c0_7 = arith.constant 0 : index
    %c0_8 = arith.constant 0 : index
    %9 = vector.load %arg5[%c0_7, %c0_8] : memref<1x256xf32, #tpu.memory_space<vmem>>, vector<1x256xf32>
    %10 = vector.broadcast %9 : vector<1x256xf32> to vector<104x256xf32>
    %11 = arith.addf %8, %10 : vector<104x256xf32>
    %c0_9 = arith.constant 0 : index
    %c0_10 = arith.constant 0 : index
    %12 = vector.load %arg6[%c0_9, %c0_10] : memref<104x256xf32, #tpu.memory_space<vmem>>, vector<104x256xf32>
    tpu.vector_store %arg6[%c0_9, %c0_10], %11 {strides = array<i32>} : memref<104x256xf32, #tpu.memory_space<vmem>>, vector<104x256xf32>,
    return
  }
  func.func @transform_0(%arg0: i32) -> (i32, i32) {
    %c0_i32 = arith.constant 0 : i32
    %c0_i32_0 = arith.constant 0 : i32
    return %arg0, %c0_i32 : i32, i32
  }
  func.func @transform_1(%arg0: i32) -> (i32, i32) {
    %c0_i32 = arith.constant 0 : i32
    %c0_i32_0 = arith.constant 0 : i32
    return %arg0, %c0_i32 : i32, i32
  }
  func.func @transform_2(%arg0: i32) -> (i32, i32) {
    %c0_i32 = arith.constant 0 : i32
    %c0_i32_0 = arith.constant 0 : i32
    %c0_i32_1 = arith.constant 0 : i32
    return %c0_i32, %c0_i32_0 : i32, i32
  }
  func.func @transform_3(%arg0: i32) -> (i32, i32) {
    %c0_i32 = arith.constant 0 : i32
    %c0_i32_0 = arith.constant 0 : i32
    %c0_i32_1 = arith.constant 0 : i32
    return %c0_i32, %c0_i32_0 : i32, i32
  }
  func.func @transform_4(%arg0: i32) -> (i32, i32) {
    %c0_i32 = arith.constant 0 : i32
    %c0_i32_0 = arith.constant 0 : i32
    %c0_i32_1 = arith.constant 0 : i32
    return %c0_i32, %c0_i32_0 : i32, i32
  }
  func.func @transform_5(%arg0: i32) -> (i32, i32) {
    %c0_i32 = arith.constant 0 : i32
    %c0_i32_0 = arith.constant 0 : i32
    return %arg0, %c0_i32 : i32, i32
  }
}

</mosaic_0001>

<llo_original>
// kernel: feature_embedding_forward.1
$region0: #{feature_embedding_forward.1}
  #allocation0 [shape = 'u32[]', space=smem, size = 0x4, offset = 0x4, fixed_abs, tag = 'smem constant byte address 0x4 - core index']
  #allocation1 [shape = 'u32[72,128]{1,0:T(1,128)}', space=vmem, size = 0x9000, scoped, tag = 'internal scratch']
  %s0 = inlined_call_operand.hbm [shape: f32[200,256], index: 0, kind: input, shape index: {}]
  %s1 = inlined_call_operand.vmem [shape: f32[200,1], index: 1, kind: input, shape index: {}]
  %s2 = inlined_call_operand.hbm [shape: f32[256,256], index: 2, kind: input, shape index: {}]
  %s3 = inlined_call_operand.vmem [shape: f32[1,256], index: 3, kind: input, shape index: {}]
  %s4 = inlined_call_operand.vmem [shape: f32[1,256], index: 4, kind: input, shape index: {}]
  %s5 = inlined_call_operand.hbm [shape: f32[200,256], index: 5, kind: output, shape index: {}]
  %s6 = sld [smem:[#allocation0]]
  $region61: #{feature_embedding_forward.1} parent=0
    _
  %s8 = ssub.s32 1, %s6
  %s9 = scalar_select 0, %s8, %s6
  $region1: #{feature_embedding_forward.1} parent=0
    #allocation2 [shape = 'u8[212992]{0}', space=vmem, size = 0x34000, scoped, tag = 'input window, operand 0']
    #allocation3 [shape = 's32[2]{0}', space=sflag, size = 0x8, scoped, tag = 'scoped memory for feature_embedding_forward.1']
    #allocation4 [shape = 's32[2]{0}', space=sflag, size = 0x8, scoped, tag = 'scoped memory for feature_embedding_forward.1']
    #allocation5 [shape = 'u8[262144]{0}', space=vmem, size = 0x40000, scoped, tag = 'input window, operand 2, single buffered']
    #allocation6 [shape = 's32[1]{0}', space=sflag, size = 0x4, scoped, tag = 'scoped memory for feature_embedding_forward.1']
    #allocation7 [shape = 'u8[212992]{0}', space=vmem, size = 0x34000, scoped, tag = 'output window, operand 0']
    %10 = vsyncpa [#allocation3], 0
    %s11 = scalar_lea.sflag [#allocation3], 1
    %12 = vsyncpa %s11, 0
    %13 = vsyncpa [#allocation6], 0
    %14 = vsyncpa [#allocation4], 0
    %s15 = scalar_lea.sflag [#allocation4], 1
    %16 = vsyncpa %s15, 0
    loop: start=0, step=1, limit=4
    $region2: #{feature_embedding_forward.1} parent=1 // loop_pre_header
      _
    $region3: #{feature_embedding_forward.1} parent=1 // loop_header
      %s18 = sphi 0, %s22
      %p19 = scmp.ge.s32.totalorder %s18, 4
      %s28 = sphi 0, %s30
      %s31 = sphi 0, %s28
      %s32 = sphi 0, %s31
      %s48 = sphi 0, %s32
      %s54 = sphi 0, %s56
      %s57 = sphi 0, %s54
      %s58 = sphi 0, %s57
      %s74 = sphi 0, %s58
      %s78 = sphi 0, %s78
      %s80 = sphi 0, %s78
      %s81 = sphi 0, %s80
      %s95 = sphi 0, %s81
      %s99 = sphi 0, %s99
      %s101 = sphi 0, %s99
      %s102 = sphi 0, %s101
      %s116 = sphi 0, %s102
      %s120 = sphi 0, %s120
      %s122 = sphi 0, %s120
      %s123 = sphi 0, %s122
      %s137 = sphi 0, %s123
      %s143 = sphi 0, %s145
      %s146 = sphi 0, %s143
      %s147 = sphi 0, %s146
      %s163 = sphi 0, %s147
    $region4: #{feature_embedding_forward.1} parent=1 // loop_header_branch
      %21 = sbr.rel (%p19) target = $region8
    $region5: #{feature_embedding_forward.1} parent=1 // loop_body
      %s23 = ssub.s32 %s18, 1
      %s24 = ssub.s32 %s18, 2
      %s25 = sadd.s32 %s18, 1
      %s26 = ssub.s32 %s18, %s25
      %p27 = scmp.eq.s32.totalorder %s26, 0
      %s29 = sadd.s32 %s28, 1
      %s30 = scalar_select %p27, %s28, %s29
      %p33 = pneg %p27
      %p34 = scmp.eq.s32.totalorder %s18, 1
      %p35 = por %p33, %p34
      %p36 = scmp.ne.s32.totalorder %s28, %s31
      %p37 = scmp.eq.s32.totalorder %s18, 0
      %p38 = por %p36, %p37
      %p39 = scmp.ne.s32.totalorder %s28, %s31
      %p40 = scmp.eq.s32.totalorder %s23, 1
      %p41 = por %p39, %p40
      %p42 = scmp.ne.s32.totalorder %s31, %s32
      %p43 = scmp.eq.s32.totalorder %s23, 0
      %p44 = por %p42, %p43
      %p45 = scmp.ne.s32.totalorder %s31, %s32
      %p46 = scmp.eq.s32.totalorder %s24, 1
      %p47 = por %p45, %p46
      %p49 = scmp.ne.s32.totalorder %s32, %s48
      %p50 = scmp.eq.s32.totalorder %s24, 0
      %p51 = por %p49, %p50
      %s52 = ssub.s32 %s18, %s25
      %p53 = scmp.eq.s32.totalorder %s52, 0
      %s55 = sadd.s32 %s54, 1
      %s56 = scalar_select %p53, %s54, %s55
      %p59 = pneg %p53
      %p60 = scmp.eq.s32.totalorder %s18, 1
      %p61 = por %p59, %p60
      %p62 = scmp.ne.s32.totalorder %s54, %s57
      %p63 = scmp.eq.s32.totalorder %s18, 0
      %p64 = por %p62, %p63
      %p65 = scmp.ne.s32.totalorder %s54, %s57
      %p66 = scmp.eq.s32.totalorder %s23, 1
      %p67 = por %p65, %p66
      %p68 = scmp.ne.s32.totalorder %s57, %s58
      %p69 = scmp.eq.s32.totalorder %s23, 0
      %p70 = por %p68, %p69
      %p71 = scmp.ne.s32.totalorder %s57, %s58
      %p72 = scmp.eq.s32.totalorder %s24, 1
      %p73 = por %p71, %p72
      %p75 = scmp.ne.s32.totalorder %s58, %s74
      %p76 = scmp.eq.s32.totalorder %s24, 0
      %p77 = por %p75, %p76
      %s79 = sadd.s32 %s78, 1
      %p82 = scmp.eq.s32.totalorder %s18, 1
      %p83 = scmp.ne.s32.totalorder %s78, %s80
      %p84 = scmp.eq.s32.totalorder %s18, 0
      %p85 = por %p83, %p84
      %p86 = scmp.ne.s32.totalorder %s78, %s80
      %p87 = scmp.eq.s32.totalorder %s23, 1
      %p88 = por %p86, %p87
      %p89 = scmp.ne.s32.totalorder %s80, %s81
      %p90 = scmp.eq.s32.totalorder %s23, 0
      %p91 = por %p89, %p90
      %p92 = scmp.ne.s32.totalorder %s80, %s81
      %p93 = scmp.eq.s32.totalorder %s24, 1
      %p94 = por %p92, %p93
      %p96 = scmp.ne.s32.totalorder %s81, %s95
      %p97 = scmp.eq.s32.totalorder %s24, 0
      %p98 = por %p96, %p97
      %s100 = sadd.s32 %s99, 1
      %p103 = scmp.eq.s32.totalorder %s18, 1
      %p104 = scmp.ne.s32.totalorder %s99, %s101
      %p105 = scmp.eq.s32.totalorder %s18, 0
      %p106 = por %p104, %p105
      %p107 = scmp.ne.s32.totalorder %s99, %s101
      %p108 = scmp.eq.s32.totalorder %s23, 1
      %p109 = por %p107, %p108
      %p110 = scmp.ne.s32.totalorder %s101, %s102
      %p111 = scmp.eq.s32.totalorder %s23, 0
      %p112 = por %p110, %p111
      %p113 = scmp.ne.s32.totalorder %s101, %s102
      %p114 = scmp.eq.s32.totalorder %s24, 1
      %p115 = por %p113, %p114
      %p117 = scmp.ne.s32.totalorder %s102, %s116
      %p118 = scmp.eq.s32.totalorder %s24, 0
      %p119 = por %p117, %p118
      %s121 = sadd.s32 %s120, 1
      %p124 = scmp.eq.s32.totalorder %s18, 1
      %p125 = scmp.ne.s32.totalorder %s120, %s122
      %p126 = scmp.eq.s32.totalorder %s18, 0
      %p127 = por %p125, %p126
      %p128 = scmp.ne.s32.totalorder %s120, %s122
      %p129 = scmp.eq.s32.totalorder %s23, 1
      %p130 = por %p128, %p129
      %p131 = scmp.ne.s32.totalorder %s122, %s123
      %p132 = scmp.eq.s32.totalorder %s23, 0
      %p133 = por %p131, %p132
      %p134 = scmp.ne.s32.totalorder %s122, %s123
      %p135 = scmp.eq.s32.totalorder %s24, 1
      %p136 = por %p134, %p135
      %p138 = scmp.ne.s32.totalorder %s123, %s137
      %p139 = scmp.eq.s32.totalorder %s24, 0
      %p140 = por %p138, %p139
      %s141 = ssub.s32 %s18, %s25
      %p142 = scmp.eq.s32.totalorder %s141, 0
      %s144 = sadd.s32 %s143, 1
      %s145 = scalar_select %p142, %s143, %s144
      %p148 = pneg %p142
      %p149 = scmp.eq.s32.totalorder %s18, 1
      %p150 = por %p148, %p149
      %p151 = scmp.ne.s32.totalorder %s143, %s146
      %p152 = scmp.eq.s32.totalorder %s18, 0
      %p153 = por %p151, %p152
      %p154 = scmp.ne.s32.totalorder %s143, %s146
      %p155 = scmp.eq.s32.totalorder %s23, 1
      %p156 = por %p154, %p155
      %p157 = scmp.ne.s32.totalorder %s146, %s147
      %p158 = scmp.eq.s32.totalorder %s23, 0
      %p159 = por %p157, %p158
      %p160 = scmp.ne.s32.totalorder %s146, %s147
      %p161 = scmp.eq.s32.totalorder %s24, 1
      %p162 = por %p160, %p161
      %p164 = scmp.ne.s32.totalorder %s147, %s163
      %p165 = scmp.eq.s32.totalorder %s24, 0
      %p166 = por %p164, %p165
      %p167 = scmp.le.s32.totalorder 1, %s18
      %p168 = scmp.lt.s32.totalorder %s18, 3
      %p169 = pnand %p167, %p168
      %p170 = pneg %p169
      // Predicated region
      $region9: #{feature_embedding_forward.1} parent=5 // pred_check
        _
      $region10: #{feature_embedding_forward.1} parent=5 // pred_check_branch
        %172 = sbr.rel (%p169) target = $region12
      $region11: #{feature_embedding_forward.1} parent=5 // pred_region
        %s173 = ssub.s32 %s18, 1
        // Predicated region
        $region13: #{feature_embedding_forward.1} parent=11 // pred_check
          %p174 = pneg %p91
        $region14: #{feature_embedding_forward.1} parent=11 // pred_check_branch
          %176 = sbr.rel (%p174) target = $region16
        $region15: #{feature_embedding_forward.1} parent=11 // pred_region
          %178 = vsyncadd [#allocation6], 0
          %s179 = sshll.u32 %s2, 4
          %s180 = int_to_ptr.hbm [resolvable:$true] %s179
          %s181 = sshll.u32 [#allocation5], 4
          %s182 = int_to_ptr.vmem [resolvable:$true] %s181
          %187 = dma.hbm_to_vmem [thread:$0]  %s180, 8192, %s182, [#allocation6], 256, 256, 16
        $region16: #{feature_embedding_forward.1} parent=11 // pred_fallthru
          _
        // Predicated region
        $region17: #{feature_embedding_forward.1} parent=11 // pred_check
          %p188 = pneg %p112
        $region18: #{feature_embedding_forward.1} parent=11 // pred_check_branch
          %190 = sbr.rel (%p188) target = $region20
        $region19: #{feature_embedding_forward.1} parent=11 // pred_region
          _
        $region20: #{feature_embedding_forward.1} parent=11 // pred_fallthru
          _
        // Predicated region
        $region21: #{feature_embedding_forward.1} parent=11 // pred_check
          %p191 = pneg %p133
        $region22: #{feature_embedding_forward.1} parent=11 // pred_check_branch
          %193 = sbr.rel (%p191) target = $region24
        $region23: #{feature_embedding_forward.1} parent=11 // pred_region
          _
        $region24: #{feature_embedding_forward.1} parent=11 // pred_fallthru
          _
      $region12: #{feature_embedding_forward.1} parent=5 // pred_fallthru
        _
      %p194 = scmp.lt.s32.totalorder %s18, 2
      // Predicated region
      $region25: #{feature_embedding_forward.1} parent=5 // pred_check
        %p195 = pneg %p194
      $region26: #{feature_embedding_forward.1} parent=5 // pred_check_branch
        %197 = sbr.rel (%p195) target = $region28
      $region27: #{feature_embedding_forward.1} parent=5 // pred_region
        // Predicated region
        $region29: #{feature_embedding_forward.1} parent=27 // pred_check
          %p198 = pneg %p38
        $region30: #{feature_embedding_forward.1} parent=27 // pred_check_branch
          %200 = sbr.rel (%p198) target = $region32
        $region31: #{feature_embedding_forward.1} parent=27 // pred_region
          %s201 = sand.u32 %s28, 1
          %s202 = scalar_lea.sflag [#allocation3], %s201
          %s203 = sand.u32 %s28, 1
          %s204 = smul.addr %s203, 208
          %s205 = scalar_lea.vmem [#allocation2], %s204
          %s206 = smul.u32 13, %s18
          %s207 = ssub.s32 25, %s206
          %p208 = scmp.lt.s32.totalorder %s207, 13
          %s209 = scalar_select %p208, %s207, 13
          %s210 = smul.u32 8, %s209
          %s211 = smul.u32 %s210, 2
          %s212 = ssub.s32 208, %s211
          %s213 = sshll.u32 %s212, 4
          %214 = vsyncadd %s202, %s213
          %p215 = scmp.ne.s32.totalorder 0, %s211
          %s216 = smul.addr %s206, 2
          %s217 = smul.addr %s216, 8
          %s218 = scalar_lea.hbm %s0, %s217
          %s219 = smul.u32 16, %s209
          %s220 = sshll.u32 %s218, 4
          %s221 = int_to_ptr.hbm [resolvable:$true] %s220
          %s222 = sshll.u32 %s205, 4
          %s223 = int_to_ptr.vmem [resolvable:$true] %s222
          %s224 = sshll.u32 %s219, 4
          %228 = dma.hbm_to_vmem [thread:$0]  (%p215), %s221, %s224, %s223, %s202, 256, 256, 16
        $region32: #{feature_embedding_forward.1} parent=27 // pred_fallthru
          _
        // Predicated region
        $region33: #{feature_embedding_forward.1} parent=27 // pred_check
          %p229 = pneg %p64
        $region34: #{feature_embedding_forward.1} parent=27 // pred_check_branch
          %231 = sbr.rel (%p229) target = $region36
        $region35: #{feature_embedding_forward.1} parent=27 // pred_region
          %s232 = smul.u32 13, %s18
          %s233 = ssub.s32 25, %s232
          %p234 = scmp.lt.s32.totalorder %s233, 13
          %s235 = scalar_select %p234, %s233, 13
          %s236 = smul.u32 8, %s235
          %p237 = scmp.lt.s32.totalorder %s232, 24
          %s238 = scalar_select %p237, %s232, 24
          %s239 = smul.addr %s238, 8
          %s240 = scalar_lea.vmem %s1, %s239
          %s241 = smul.u32 13, %s18
          %s242 = ssub.s32 25, %s241
          %p243 = scmp.lt.s32.totalorder %s242, 13
          %s244 = scalar_select %p243, %s242, 13
          %s245 = smul.u32 8, %s244
        $region36: #{feature_embedding_forward.1} parent=27 // pred_fallthru
          _
      $region28: #{feature_embedding_forward.1} parent=5 // pred_fallthru
        _
      %p246 = scmp.le.s32.totalorder 1, %s18
      %p247 = scmp.lt.s32.totalorder %s18, 3
      %p248 = pnand %p246, %p247
      %p249 = pneg %p248
      // Predicated region
      $region37: #{feature_embedding_forward.1} parent=5 // pred_check
        _
      $region38: #{feature_embedding_forward.1} parent=5 // pred_check_branch
        %251 = sbr.rel (%p248) target = $region40
      $region39: #{feature_embedding_forward.1} parent=5 // pred_region
        %s252 = ssub.s32 %s18, 1
        %s253 = sand.u32 %s31, 1
        %s254 = scalar_lea.sflag [#allocation3], %s253
        %s255 = sand.u32 %s31, 1
        %s256 = smul.addr %s255, 208
        %s257 = scalar_lea.vmem [#allocation2], %s256
        // Predicated region
        $region41: #{feature_embedding_forward.1} parent=39 // pred_check
          %p258 = pneg %p44
        $region42: #{feature_embedding_forward.1} parent=39 // pred_check_branch
          %260 = sbr.rel (%p258) target = $region44
        $region43: #{feature_embedding_forward.1} parent=39 // pred_region
          %262 = dma.done %s254, 3328
        $region44: #{feature_embedding_forward.1} parent=39 // pred_fallthru
          _
        // Predicated region
        $region45: #{feature_embedding_forward.1} parent=39 // pred_check
          %p263 = pneg %p91
        $region46: #{feature_embedding_forward.1} parent=39 // pred_check_branch
          %265 = sbr.rel (%p263) target = $region48
        $region47: #{feature_embedding_forward.1} parent=39 // pred_region
          %267 = dma.done [#allocation6], 8192
        $region48: #{feature_embedding_forward.1} parent=39 // pred_fallthru
          _
        %s268 = sand.u32 %s31, 1
        %s269 = scalar_lea.sflag [#allocation3], %s268
        %s270 = sand.u32 %s31, 1
        %s271 = smul.addr %s270, 208
        %s272 = scalar_lea.vmem [#allocation2], %s271
        %p273 = pneg %p44
        %p274 = pneg %p41
        %s275 = smul.u32 13, %s23
        %s276 = ssub.s32 25, %s275
        %p277 = scmp.lt.s32.totalorder %s276, 13
        %s278 = scalar_select %p277, %s276, 13
        %s279 = smul.u32 8, %s278
        %p280 = scmp.lt.s32.totalorder %s275, 24
        %s281 = scalar_select %p280, %s275, 24
        %s282 = smul.addr %s281, 8
        %s283 = scalar_lea.vmem %s1, %s282
        %p284 = pneg %p70
        %p285 = pneg %p67
        %p286 = pneg %p91
        %p287 = pneg %p88
        %p288 = pneg %p112
        %p289 = pneg %p109
        %p290 = pneg %p133
        %p291 = pneg %p130
        %p292 = pneg %p159
        %p293 = pneg %p156
        %s294 = sand.u32 %s146, 1
        %s295 = scalar_lea.sflag [#allocation4], %s294
        %s296 = sand.u32 %s146, 1
        %s297 = smul.addr %s296, 208
        %s298 = scalar_lea.vmem [#allocation7], %s297
        %s299 = smul.u32 13, %s23
        %s300 = ssub.s32 25, %s299
        %p301 = scmp.lt.s32.totalorder %s300, 13
        %s302 = scalar_select %p301, %s300, 13
        %s303 = smul.u32 8, %s302
        %s304 = smul.u32 %s303, 2
        %s305 = smul.u32 13, %s23
        %s306 = ssub.s32 25, %s305
        %p307 = scmp.lt.s32.totalorder %s306, 13
        %s308 = scalar_select %p307, %s306, 13
        %s309 = smul.u32 8, %s308
        %p310 = scmp.lt.s32.totalorder %s305, 24
        %s311 = scalar_select %p310, %s305, 24
        %s312 = smul.addr %s311, 8
        %s313 = scalar_lea.vmem %s1, %s312
        %s314 = smul.u32 13, %s23
        %s315 = ssub.s32 25, %s314
        %p316 = scmp.lt.s32.totalorder %s315, 13
        %s317 = scalar_select %p316, %s315, 13
        %s318 = smul.u32 8, %s317
        %s319 = smul.u32 13, %s23
        %s320 = ssub.s32 25, %s319
        %p321 = scmp.lt.s32.totalorder %s320, 13
        %s322 = scalar_select %p321, %s320, 13
        %s323 = smul.u32 8, %s322
        %s324 = smul.u32 %s323, 2
        %v325 = vld [vmem:[%s257] sm:$0xff]
        %v326 = vld [vmem:[%s257 + $0x8] sm:$0xff]
        %v327 = vld [vmem:[%s257 + $0x10] sm:$0xff]
        %v328 = vld [vmem:[%s257 + $0x18] sm:$0xff]
        %v329 = vld [vmem:[%s257 + $0x20] sm:$0xff]
        %v330 = vld [vmem:[%s257 + $0x28] sm:$0xff]
        %v331 = vld [vmem:[%s257 + $0x30] sm:$0xff]
        %v332 = vld [vmem:[%s257 + $0x38] sm:$0xff]
        %v333 = vld [vmem:[%s257 + $0x40] sm:$0xff]
        %v334 = vld [vmem:[%s257 + $0x48] sm:$0xff]
        %v335 = vld [vmem:[%s257 + $0x50] sm:$0xff]
        %v336 = vld [vmem:[%s257 + $0x58] sm:$0xff]
        %v337 = vld [vmem:[%s257 + $0x60] sm:$0xff]
        %v338 = vld [vmem:[%s257 + $0x68] sm:$0xff]
        %v339 = vld [vmem:[%s257 + $0x70] sm:$0xff]
        %v340 = vld [vmem:[%s257 + $0x78] sm:$0xff]
        %v341 = vld [vmem:[%s257 + $0x80] sm:$0xff]
        %v342 = vld [vmem:[%s257 + $0x88] sm:$0xff]
        %v343 = vld [vmem:[%s257 + $0x90] sm:$0xff]
        %v344 = vld [vmem:[%s257 + $0x98] sm:$0xff]
        %v345 = vld [vmem:[%s257 + $0xa0] sm:$0xff]
        %v346 = vld [vmem:[%s257 + $0xa8] sm:$0xff]
        %v347 = vld [vmem:[%s257 + $0xb0] sm:$0xff]
        %v348 = vld [vmem:[%s257 + $0xb8] sm:$0xff]
        %v349 = vld [vmem:[%s257 + $0xc0] sm:$0xff]
        %v350 = vld [vmem:[%s257 + $0xc8] sm:$0xff]
        %v351 = vld [vmem:[#allocation5] sm:$0xff]
        %v352 = vld [vmem:[#allocation5 + $0x8] sm:$0xff]
        %v353 = vld [vmem:[#allocation5 + $0x10] sm:$0xff]
        %v354 = vld [vmem:[#allocation5 + $0x18] sm:$0xff]
        %v355 = vld [vmem:[#allocation5 + $0x20] sm:$0xff]
        %v356 = vld [vmem:[#allocation5 + $0x28] sm:$0xff]
        %v357 = vld [vmem:[#allocation5 + $0x30] sm:$0xff]
        %v358 = vld [vmem:[#allocation5 + $0x38] sm:$0xff]
        %v359 = vld [vmem:[#allocation5 + $0x40] sm:$0xff]
        %v360 = vld [vmem:[#allocation5 + $0x48] sm:$0xff]
        %v361 = vld [vmem:[#allocation5 + $0x50] sm:$0xff]
        %v362 = vld [vmem:[#allocation5 + $0x58] sm:$0xff]
        %v363 = vld [vmem:[#allocation5 + $0x60] sm:$0xff]
        %v364 = vld [vmem:[#allocation5 + $0x68] sm:$0xff]
        %v365 = vld [vmem:[#allocation5 + $0x70] sm:$0xff]
        %v366 = vld [vmem:[#allocation5 + $0x78] sm:$0xff]
        %v367 = vld [vmem:[#allocation5 + $0x80] sm:$0xff]
        %v368 = vld [vmem:[#allocation5 + $0x88] sm:$0xff]
        %v369 = vld [vmem:[#allocation5 + $0x90] sm:$0xff]
        %v370 = vld [vmem:[#allocation5 + $0x98] sm:$0xff]
        %v371 = vld [vmem:[#allocation5 + $0xa0] sm:$0xff]
        %v372 = vld [vmem:[#allocation5 + $0xa8] sm:$0xff]
        %v373 = vld [vmem:[#allocation5 + $0xb0] sm:$0xff]
        %v374 = vld [vmem:[#allocation5 + $0xb8] sm:$0xff]
        %v375 = vld [vmem:[#allocation5 + $0xc0] sm:$0xff]
        %v376 = vld [vmem:[#allocation5 + $0xc8] sm:$0xff]
        %v377 = vld [vmem:[#allocation5 + $0xd0] sm:$0xff]
        %v378 = vld [vmem:[#allocation5 + $0xd8] sm:$0xff]
        %v379 = vld [vmem:[#allocation5 + $0xe0] sm:$0xff]
        %v380 = vld [vmem:[#allocation5 + $0xe8] sm:$0xff]
        %v381 = vld [vmem:[#allocation5 + $0xf0] sm:$0xff]
        %v382 = vld [vmem:[#allocation5 + $0xf8] sm:$0xff]
        %v383 = vld [vmem:[#allocation5 + $0x100] sm:$0xff]
        %v384 = vld [vmem:[#allocation5 + $0x108] sm:$0xff]
        %v385 = vld [vmem:[#allocation5 + $0x110] sm:$0xff]
        %v386 = vld [vmem:[#allocation5 + $0x118] sm:$0xff]
        %v387 = vld [vmem:[#allocation5 + $0x120] sm:$0xff]
        %v388 = vld [vmem:[#allocation5 + $0x128] sm:$0xff]
        %v389 = vld [vmem:[#allocation5 + $0x130] sm:$0xff]
        %v390 = vld [vmem:[#allocation5 + $0x138] sm:$0xff]
        %v391 = vld [vmem:[#allocation5 + $0x140] sm:$0xff]
        %v392 = vld [vmem:[#allocation5 + $0x148] sm:$0xff]
        %v393 = vld [vmem:[#allocation5 + $0x150] sm:$0xff]
        %v394 = vld [vmem:[#allocation5 + $0x158] sm:$0xff]
        %v395 = vld [vmem:[#allocation5 + $0x160] sm:$0xff]
        %v396 = vld [vmem:[#allocation5 + $0x168] sm:$0xff]
        %v397 = vld [vmem:[#allocation5 + $0x170] sm:$0xff]
        %v398 = vld [vmem:[#allocation5 + $0x178] sm:$0xff]
        %v399 = vld [vmem:[#allocation5 + $0x180] sm:$0xff]
        %v400 = vld [vmem:[#allocation5 + $0x188] sm:$0xff]
        %v401 = vld [vmem:[#allocation5 + $0x190] sm:$0xff]
        %v402 = vld [vmem:[#allocation5 + $0x198] sm:$0xff]
        %v403 = vld [vmem:[#allocation5 + $0x1a0] sm:$0xff]
        %v404 = vld [vmem:[#allocation5 + $0x1a8] sm:$0xff]
        %v405 = vld [vmem:[#allocation5 + $0x1b0] sm:$0xff]
        %v406 = vld [vmem:[#allocation5 + $0x1b8] sm:$0xff]
        %v407 = vld [vmem:[#allocation5 + $0x1c0] sm:$0xff]
        %v408 = vld [vmem:[#allocation5 + $0x1c8] sm:$0xff]
        %v409 = vld [vmem:[#allocation5 + $0x1d0] sm:$0xff]
        %v410 = vld [vmem:[#allocation5 + $0x1d8] sm:$0xff]
        %v411 = vld [vmem:[#allocation5 + $0x1e0] sm:$0xff]
        %v412 = vld [vmem:[#allocation5 + $0x1e8] sm:$0xff]
        %v413 = vld [vmem:[#allocation5 + $0x1f0] sm:$0xff]
        %v414 = vld [vmem:[#allocation5 + $0x1f8] sm:$0xff]
        %v415 = vld [vmem:[%s313] sm:$0xff]
        %v416 = vld [vmem:[%s313 + $0x8] sm:$0xff]
        %v417 = vld [vmem:[%s313 + $0x10] sm:$0xff]
        %v418 = vld [vmem:[%s313 + $0x18] sm:$0xff]
        %v419 = vld [vmem:[%s313 + $0x20] sm:$0xff]
        %v420 = vld [vmem:[%s313 + $0x28] sm:$0xff]
        %v421 = vld [vmem:[%s313 + $0x30] sm:$0xff]
        %v422 = vld [vmem:[%s313 + $0x38] sm:$0xff]
        %v423 = vld [vmem:[%s313 + $0x40] sm:$0xff]
        %v424 = vld [vmem:[%s313 + $0x48] sm:$0xff]
        %v425 = vld [vmem:[%s313 + $0x50] sm:$0xff]
        %v426 = vld [vmem:[%s313 + $0x58] sm:$0xff]
        %v427 = vld [vmem:[%s313 + $0x60] sm:$0xff]
        %v428 = vld [vmem:[%s3] sm:$0x3]
        %430 = vset.pattern.permute.xlu0 0
        %431 = vperm.xlu0 %430, %v415
        %v432 = vpop.permute.xlu0 %431
        %435 = vset.pattern.permute.xlu0 0
        %436 = vperm.xlu0 %435, %v416
        %v437 = vpop.permute.xlu0 %436
        %440 = vset.pattern.permute.xlu0 0
        %441 = vperm.xlu0 %440, %v417
        %v442 = vpop.permute.xlu0 %441
        %445 = vset.pattern.permute.xlu0 0
        %446 = vperm.xlu0 %445, %v418
        %v447 = vpop.permute.xlu0 %446
        %450 = vset.pattern.permute.xlu0 0
        %451 = vperm.xlu0 %450, %v419
        %v452 = vpop.permute.xlu0 %451
        %455 = vset.pattern.permute.xlu0 0
        %456 = vperm.xlu0 %455, %v420
        %v457 = vpop.permute.xlu0 %456
        %460 = vset.pattern.permute.xlu0 0
        %461 = vperm.xlu0 %460, %v421
        %v462 = vpop.permute.xlu0 %461
        %465 = vset.pattern.permute.xlu0 0
        %466 = vperm.xlu0 %465, %v422
        %v467 = vpop.permute.xlu0 %466
        %470 = vset.pattern.permute.xlu0 0
        %471 = vperm.xlu0 %470, %v423
        %v472 = vpop.permute.xlu0 %471
        %475 = vset.pattern.permute.xlu0 0
        %476 = vperm.xlu0 %475, %v424
        %v477 = vpop.permute.xlu0 %476
        %480 = vset.pattern.permute.xlu0 0
        %481 = vperm.xlu0 %480, %v425
        %v482 = vpop.permute.xlu0 %481
        %485 = vset.pattern.permute.xlu0 0
        %486 = vperm.xlu0 %485, %v426
        %v487 = vpop.permute.xlu0 %486
        %490 = vset.pattern.permute.xlu0 0
        %491 = vperm.xlu0 %490, %v427
        %v492 = vpop.permute.xlu0 %491
        %v495 = vperm.slane %v428, 0
        %v496 = vperm.slane %v428, 1
        %v499 = vmul.f32 %v432, %v495
        %v500 = vmul.f32 %v432, %v496
        %v501 = vmul.f32 %v437, %v495
        %v502 = vmul.f32 %v437, %v496
        %v503 = vmul.f32 %v442, %v495
        %v504 = vmul.f32 %v442, %v496
        %v505 = vmul.f32 %v447, %v495
        %v506 = vmul.f32 %v447, %v496
        %v507 = vmul.f32 %v452, %v495
        %v508 = vmul.f32 %v452, %v496
        %v509 = vmul.f32 %v457, %v495
        %v510 = vmul.f32 %v457, %v496
        %v511 = vmul.f32 %v462, %v495
        %v512 = vmul.f32 %v462, %v496
        %v513 = vmul.f32 %v467, %v495
        %v514 = vmul.f32 %v467, %v496
        %v515 = vmul.f32 %v472, %v495
        %v516 = vmul.f32 %v472, %v496
        %v517 = vmul.f32 %v477, %v495
        %v518 = vmul.f32 %v477, %v496
        %v519 = vmul.f32 %v482, %v495
        %v520 = vmul.f32 %v482, %v496
        %v521 = vmul.f32 %v487, %v495
        %v522 = vmul.f32 %v487, %v496
        %v523 = vmul.f32 %v492, %v495
        %v524 = vmul.f32 %v492, %v496
        %525 = vmatpush.msra.mxu0 %v381
        %526 = vmatpush.msra.mxu0 %v379
        %527 = vmatpush.msra.mxu0 %v377
        %528 = vmatpush.msra.mxu0 %v375
        %529 = vmatpush.msra.mxu0 %v373
        %530 = vmatpush.msra.mxu0 %v371
        %531 = vmatpush.msra.mxu0 %v369
        %532 = vmatpush.msra.mxu0 %v367
        %533 = vmatpush.msra.mxu0 %v365
        %534 = vmatpush.msra.mxu0 %v363
        %535 = vmatpush.msra.mxu0 %v361
        %536 = vmatpush.msra.mxu0 %v359
        %537 = vmatpush.msra.mxu0 %v357
        %538 = vmatpush.msra.mxu0 %v355
        %539 = vmatpush.msra.mxu0 %v353
        %540 = vmatpush.msra.mxu0 %v351
        %541 = vmatmul.f32.gmra.mxu0 %v325
        %v542 = vpop.f32.mrf.mxu0
        %v543 = vadd.f32 %v499, %v542
        %544 = vmatmul.f32.gmra.mxu0 %v327
        %v545 = vpop.f32.mrf.mxu0
        %v546 = vadd.f32 %v501, %v545
        %547 = vmatmul.f32.gmra.mxu0 %v329
        %v548 = vpop.f32.mrf.mxu0
        %v549 = vadd.f32 %v503, %v548
        %550 = vmatmul.f32.gmra.mxu0 %v331
        %v551 = vpop.f32.mrf.mxu0
        %v552 = vadd.f32 %v505, %v551
        %553 = vmatmul.f32.gmra.mxu0 %v333
        %v554 = vpop.f32.mrf.mxu0
        %v555 = vadd.f32 %v507, %v554
        %556 = vmatmul.f32.gmra.mxu0 %v335
        %v557 = vpop.f32.mrf.mxu0
        %v558 = vadd.f32 %v509, %v557
        %559 = vmatmul.f32.gmra.mxu0 %v337
        %v560 = vpop.f32.mrf.mxu0
        %v561 = vadd.f32 %v511, %v560
        %562 = vmatmul.f32.gmra.mxu0 %v339
        %v563 = vpop.f32.mrf.mxu0
        %v564 = vadd.f32 %v513, %v563
        %565 = vmatmul.f32.gmra.mxu0 %v341
        %v566 = vpop.f32.mrf.mxu0
        %v567 = vadd.f32 %v515, %v566
        %568 = vmatmul.f32.gmra.mxu0 %v343
        %v569 = vpop.f32.mrf.mxu0
        %v570 = vadd.f32 %v517, %v569
        %571 = vmatmul.f32.gmra.mxu0 %v345
        %v572 = vpop.f32.mrf.mxu0
        %v573 = vadd.f32 %v519, %v572
        %574 = vmatmul.f32.gmra.mxu0 %v347
        %v575 = vpop.f32.mrf.mxu0
        %v576 = vadd.f32 %v521, %v575
        %577 = vmatmul.f32.gmra.mxu0 %v349
        %v578 = vpop.f32.mrf.mxu0
        %v579 = vadd.f32 %v523, %v578
        %580 = vdwg.mxu0
        %581 = vmatpush.msra.mxu0 %v413
        %582 = vmatpush.msra.mxu0 %v411
        %583 = vmatpush.msra.mxu0 %v409
        %584 = vmatpush.msra.mxu0 %v407
        %585 = vmatpush.msra.mxu0 %v405
        %586 = vmatpush.msra.mxu0 %v403
        %587 = vmatpush.msra.mxu0 %v401
        %588 = vmatpush.msra.mxu0 %v399
        %589 = vmatpush.msra.mxu0 %v397
        %590 = vmatpush.msra.mxu0 %v395
        %591 = vmatpush.msra.mxu0 %v393
        %592 = vmatpush.msra.mxu0 %v391
        %593 = vmatpush.msra.mxu0 %v389
        %594 = vmatpush.msra.mxu0 %v387
        %595 = vmatpush.msra.mxu0 %v385
        %596 = vmatpush.msra.mxu0 %v383
        %597 = vmatmul.f32.gmra.mxu0 %v326
        %v598 = vpop.f32.mrf.mxu0
        %v599 = vadd.f32 %v543, %v598
        %600 = vmatmul.f32.gmra.mxu0 %v328
        %v601 = vpop.f32.mrf.mxu0
        %v602 = vadd.f32 %v546, %v601
        %603 = vmatmul.f32.gmra.mxu0 %v330
        %v604 = vpop.f32.mrf.mxu0
        %v605 = vadd.f32 %v549, %v604
        %606 = vmatmul.f32.gmra.mxu0 %v332
        %v607 = vpop.f32.mrf.mxu0
        %v608 = vadd.f32 %v552, %v607
        %609 = vmatmul.f32.gmra.mxu0 %v334
        %v610 = vpop.f32.mrf.mxu0
        %v611 = vadd.f32 %v555, %v610
        %612 = vmatmul.f32.gmra.mxu0 %v336
        %v613 = vpop.f32.mrf.mxu0
        %v614 = vadd.f32 %v558, %v613
        %615 = vmatmul.f32.gmra.mxu0 %v338
        %v616 = vpop.f32.mrf.mxu0
        %v617 = vadd.f32 %v561, %v616
        %618 = vmatmul.f32.gmra.mxu0 %v340
        %v619 = vpop.f32.mrf.mxu0
        %v620 = vadd.f32 %v564, %v619
        %621 = vmatmul.f32.gmra.mxu0 %v342
        %v622 = vpop.f32.mrf.mxu0
        %v623 = vadd.f32 %v567, %v622
        %624 = vmatmul.f32.gmra.mxu0 %v344
        %v625 = vpop.f32.mrf.mxu0
        %v626 = vadd.f32 %v570, %v625
        %627 = vmatmul.f32.gmra.mxu0 %v346
        %v628 = vpop.f32.mrf.mxu0
        %v629 = vadd.f32 %v573, %v628
        %630 = vmatmul.f32.gmra.mxu0 %v348
        %v631 = vpop.f32.mrf.mxu0
        %v632 = vadd.f32 %v576, %v631
        %633 = vmatmul.f32.gmra.mxu0 %v350
        %v634 = vpop.f32.mrf.mxu0
        %v635 = vadd.f32 %v579, %v634
        %636 = vdwg.mxu0
        %637 = vmatpush.msra.mxu0 %v382
        %638 = vmatpush.msra.mxu0 %v380
        %639 = vmatpush.msra.mxu0 %v378
        %640 = vmatpush.msra.mxu0 %v376
        %641 = vmatpush.msra.mxu0 %v374
        %642 = vmatpush.msra.mxu0 %v372
        %643 = vmatpush.msra.mxu0 %v370
        %644 = vmatpush.msra.mxu0 %v368
        %645 = vmatpush.msra.mxu0 %v366
        %646 = vmatpush.msra.mxu0 %v364
        %647 = vmatpush.msra.mxu0 %v362
        %648 = vmatpush.msra.mxu0 %v360
        %649 = vmatpush.msra.mxu0 %v358
        %650 = vmatpush.msra.mxu0 %v356
        %651 = vmatpush.msra.mxu0 %v354
        %652 = vmatpush.msra.mxu0 %v352
        %653 = vmatmul.f32.gmra.mxu0 %v325
        %v654 = vpop.f32.mrf.mxu0
        %v655 = vadd.f32 %v500, %v654
        %656 = vmatmul.f32.gmra.mxu0 %v327
        %v657 = vpop.f32.mrf.mxu0
        %v658 = vadd.f32 %v502, %v657
        %659 = vmatmul.f32.gmra.mxu0 %v329
        %v660 = vpop.f32.mrf.mxu0
        %v661 = vadd.f32 %v504, %v660
        %662 = vmatmul.f32.gmra.mxu0 %v331
        %v663 = vpop.f32.mrf.mxu0
        %v664 = vadd.f32 %v506, %v663
        %665 = vmatmul.f32.gmra.mxu0 %v333
        %v666 = vpop.f32.mrf.mxu0
        %v667 = vadd.f32 %v508, %v666
        %668 = vmatmul.f32.gmra.mxu0 %v335
        %v669 = vpop.f32.mrf.mxu0
        %v670 = vadd.f32 %v510, %v669
        %671 = vmatmul.f32.gmra.mxu0 %v337
        %v672 = vpop.f32.mrf.mxu0
        %v673 = vadd.f32 %v512, %v672
        %674 = vmatmul.f32.gmra.mxu0 %v339
        %v675 = vpop.f32.mrf.mxu0
        %v676 = vadd.f32 %v514, %v675
        %677 = vmatmul.f32.gmra.mxu0 %v341
        %v678 = vpop.f32.mrf.mxu0
        %v679 = vadd.f32 %v516, %v678
        %680 = vmatmul.f32.gmra.mxu0 %v343
        %v681 = vpop.f32.mrf.mxu0
        %v682 = vadd.f32 %v518, %v681
        %683 = vmatmul.f32.gmra.mxu0 %v345
        %v684 = vpop.f32.mrf.mxu0
        %v685 = vadd.f32 %v520, %v684
        %686 = vmatmul.f32.gmra.mxu0 %v347
        %v687 = vpop.f32.mrf.mxu0
        %v688 = vadd.f32 %v522, %v687
        %689 = vmatmul.f32.gmra.mxu0 %v349
        %v690 = vpop.f32.mrf.mxu0
        %v691 = vadd.f32 %v524, %v690
        %692 = vdwg.mxu0
        %693 = vmatpush.msra.mxu0 %v414
        %694 = vmatpush.msra.mxu0 %v412
        %695 = vmatpush.msra.mxu0 %v410
        %696 = vmatpush.msra.mxu0 %v408
        %697 = vmatpush.msra.mxu0 %v406
        %698 = vmatpush.msra.mxu0 %v404
        %699 = vmatpush.msra.mxu0 %v402
        %700 = vmatpush.msra.mxu0 %v400
        %701 = vmatpush.msra.mxu0 %v398
        %702 = vmatpush.msra.mxu0 %v396
        %703 = vmatpush.msra.mxu0 %v394
        %704 = vmatpush.msra.mxu0 %v392
        %705 = vmatpush.msra.mxu0 %v390
        %706 = vmatpush.msra.mxu0 %v388
        %707 = vmatpush.msra.mxu0 %v386
        %708 = vmatpush.msra.mxu0 %v384
        %709 = vmatmul.f32.gmra.mxu0 %v326
        %v710 = vpop.f32.mrf.mxu0
        %v711 = vadd.f32 %v655, %v710
        %712 = vmatmul.f32.gmra.mxu0 %v328
        %v713 = vpop.f32.mrf.mxu0
        %v714 = vadd.f32 %v658, %v713
        %715 = vmatmul.f32.gmra.mxu0 %v330
        %v716 = vpop.f32.mrf.mxu0
        %v717 = vadd.f32 %v661, %v716
        %718 = vmatmul.f32.gmra.mxu0 %v332
        %v719 = vpop.f32.mrf.mxu0
        %v720 = vadd.f32 %v664, %v719
        %721 = vmatmul.f32.gmra.mxu0 %v334
        %v722 = vpop.f32.mrf.mxu0
        %v723 = vadd.f32 %v667, %v722
        %724 = vmatmul.f32.gmra.mxu0 %v336
        %v725 = vpop.f32.mrf.mxu0
        %v726 = vadd.f32 %v670, %v725
        %727 = vmatmul.f32.gmra.mxu0 %v338
        %v728 = vpop.f32.mrf.mxu0
        %v729 = vadd.f32 %v673, %v728
        %730 = vmatmul.f32.gmra.mxu0 %v340
        %v731 = vpop.f32.mrf.mxu0
        %v732 = vadd.f32 %v676, %v731
        %733 = vmatmul.f32.gmra.mxu0 %v342
        %v734 = vpop.f32.mrf.mxu0
        %v735 = vadd.f32 %v679, %v734
        %736 = vmatmul.f32.gmra.mxu0 %v344
        %v737 = vpop.f32.mrf.mxu0
        %v738 = vadd.f32 %v682, %v737
        %739 = vmatmul.f32.gmra.mxu0 %v346
        %v740 = vpop.f32.mrf.mxu0
        %v741 = vadd.f32 %v685, %v740
        %742 = vmatmul.f32.gmra.mxu0 %v348
        %v743 = vpop.f32.mrf.mxu0
        %v744 = vadd.f32 %v688, %v743
        %745 = vmatmul.f32.gmra.mxu0 %v350
        %v746 = vpop.f32.mrf.mxu0
        %v747 = vadd.f32 %v691, %v746
        %748 = vdwg.mxu0
        %v749 = vld [vmem:[%s4] sm:$0x3]
        %v751 = vperm.slane %v749, 0
        %v752 = vperm.slane %v749, 1
        %v755 = vadd.f32 %v599, %v751
        %v756 = vadd.f32 %v711, %v752
        %v757 = vadd.f32 %v602, %v751
        %v758 = vadd.f32 %v714, %v752
        %v759 = vadd.f32 %v605, %v751
        %v760 = vadd.f32 %v717, %v752
        %v761 = vadd.f32 %v608, %v751
        %v762 = vadd.f32 %v720, %v752
        %v763 = vadd.f32 %v611, %v751
        %v764 = vadd.f32 %v723, %v752
        %v765 = vadd.f32 %v614, %v751
        %v766 = vadd.f32 %v726, %v752
        %v767 = vadd.f32 %v617, %v751
        %v768 = vadd.f32 %v729, %v752
        %v769 = vadd.f32 %v620, %v751
        %v770 = vadd.f32 %v732, %v752
        %v771 = vadd.f32 %v623, %v751
        %v772 = vadd.f32 %v735, %v752
        %v773 = vadd.f32 %v626, %v751
        %v774 = vadd.f32 %v738, %v752
        %v775 = vadd.f32 %v629, %v751
        %v776 = vadd.f32 %v741, %v752
        %v777 = vadd.f32 %v632, %v751
        %v778 = vadd.f32 %v744, %v752
        %v779 = vadd.f32 %v635, %v751
        %v780 = vadd.f32 %v747, %v752
        %781 = vst [vmem:[%s298] sm:$0xff] %v755
        %782 = vst [vmem:[%s298 + $0x8] sm:$0xff] %v756
        %783 = vst [vmem:[%s298 + $0x10] sm:$0xff] %v757
        %784 = vst [vmem:[%s298 + $0x18] sm:$0xff] %v758
        %785 = vst [vmem:[%s298 + $0x20] sm:$0xff] %v759
        %786 = vst [vmem:[%s298 + $0x28] sm:$0xff] %v760
        %787 = vst [vmem:[%s298 + $0x30] sm:$0xff] %v761
        %788 = vst [vmem:[%s298 + $0x38] sm:$0xff] %v762
        %789 = vst [vmem:[%s298 + $0x40] sm:$0xff] %v763
        %790 = vst [vmem:[%s298 + $0x48] sm:$0xff] %v764
        %791 = vst [vmem:[%s298 + $0x50] sm:$0xff] %v765
        %792 = vst [vmem:[%s298 + $0x58] sm:$0xff] %v766
        %793 = vst [vmem:[%s298 + $0x60] sm:$0xff] %v767
        %794 = vst [vmem:[%s298 + $0x68] sm:$0xff] %v768
        %795 = vst [vmem:[%s298 + $0x70] sm:$0xff] %v769
        %796 = vst [vmem:[%s298 + $0x78] sm:$0xff] %v770
        %797 = vst [vmem:[%s298 + $0x80] sm:$0xff] %v771
        %798 = vst [vmem:[%s298 + $0x88] sm:$0xff] %v772
        %799 = vst [vmem:[%s298 + $0x90] sm:$0xff] %v773
        %800 = vst [vmem:[%s298 + $0x98] sm:$0xff] %v774
        %801 = vst [vmem:[%s298 + $0xa0] sm:$0xff] %v775
        %802 = vst [vmem:[%s298 + $0xa8] sm:$0xff] %v776
        %803 = vst [vmem:[%s298 + $0xb0] sm:$0xff] %v777
        %804 = vst [vmem:[%s298 + $0xb8] sm:$0xff] %v778
        %805 = vst [vmem:[%s298 + $0xc0] sm:$0xff] %v779
        %806 = vst [vmem:[%s298 + $0xc8] sm:$0xff] %v780
        %s807 = sand.u32 %s146, 1
        %s808 = scalar_lea.sflag [#allocation4], %s807
        %s809 = sand.u32 %s146, 1
        %s810 = smul.addr %s809, 208
        %s811 = scalar_lea.vmem [#allocation7], %s810
        // Predicated region
        $region49: #{feature_embedding_forward.1} parent=39 // pred_check
          %p812 = pneg %p156
        $region50: #{feature_embedding_forward.1} parent=39 // pred_check_branch
          %814 = sbr.rel (%p812) target = $region52
        $region51: #{feature_embedding_forward.1} parent=39 // pred_region
          %s815 = smul.u32 13, %s23
          %s816 = ssub.s32 25, %s815
          %p817 = scmp.lt.s32.totalorder %s816, 13
          %s818 = scalar_select %p817, %s816, 13
          %s819 = smul.u32 8, %s818
          %s820 = smul.u32 %s819, 2
          %s821 = ssub.s32 208, %s820
          %s822 = sshll.u32 %s821, 4
          %823 = vsyncadd %s808, %s822
          %p824 = scmp.ne.s32.totalorder 0, %s820
          %s825 = smul.addr %s815, 2
          %s826 = smul.addr %s825, 8
          %s827 = scalar_lea.hbm %s5, %s826
          %s828 = smul.u32 16, %s818
          %s829 = sshll.u32 %s811, 4
          %s830 = int_to_ptr.vmem [resolvable:$true] %s829
          %s831 = sshll.u32 %s827, 4
          %s832 = int_to_ptr.hbm [resolvable:$true] %s831
          %s833 = sshll.u32 %s828, 4
          %837 = dma.vmem_to_hbm [thread:$0]  (%p824), %s830, %s833, %s832, %s808, 256, 256, 16
        $region52: #{feature_embedding_forward.1} parent=39 // pred_fallthru
          _
      $region40: #{feature_embedding_forward.1} parent=5 // pred_fallthru
        _
      %p838 = scmp.le.s32.totalorder 2, %s18
      // Predicated region
      $region53: #{feature_embedding_forward.1} parent=5 // pred_check
        %p839 = pneg %p838
      $region54: #{feature_embedding_forward.1} parent=5 // pred_check_branch
        %841 = sbr.rel (%p839) target = $region56
      $region55: #{feature_embedding_forward.1} parent=5 // pred_region
        %s842 = ssub.s32 %s18, 2
        // Predicated region
        $region57: #{feature_embedding_forward.1} parent=55 // pred_check
          %p843 = pneg %p162
        $region58: #{feature_embedding_forward.1} parent=55 // pred_check_branch
          %845 = sbr.rel (%p843) target = $region60
        $region59: #{feature_embedding_forward.1} parent=55 // pred_region
          %s846 = sand.u32 %s147, 1
          %s847 = scalar_lea.sflag [#allocation4], %s846
          %s848 = sand.u32 %s147, 1
          %s849 = smul.addr %s848, 208
          %s850 = scalar_lea.vmem [#allocation7], %s849
          %852 = dma.done %s847, 3328
        $region60: #{feature_embedding_forward.1} parent=55 // pred_fallthru
          _
      $region56: #{feature_embedding_forward.1} parent=5 // pred_fallthru
        _
    $region6: #{feature_embedding_forward.1} parent=1 // loop_footer
      %s22 = sadd.s32 1, %s18
    $region7: #{feature_embedding_forward.1} parent=1 // loop_footer_branch
      %17 = sbr.rel target = $region3
    $region8: #{feature_embedding_forward.1} parent=1 // loop_exit
      _
    %853 = vsyncpa [#allocation3], 1
    %s854 = scalar_lea.sflag [#allocation3], 1
    %855 = vsyncpa %s854, 1
    %856 = vsyncpa [#allocation6], 1
    %857 = vsyncpa [#allocation4], 1
    %s858 = scalar_lea.sflag [#allocation4], 1
    %859 = vsyncpa %s858, 1

</llo_original>
